<compile_context>
chip_gen: v7x
topology: tpu7x:2x2x1
jax: 0.10.0
libtpu: 0.0.40
codegen_flags: <defaults>
</compile_context>

<pallas_src>
import functools

import jax
import jax.numpy as jnp
from jax.experimental import pallas as pl
from jax.experimental.pallas import tpu as pltpu


def _mse_partial_kernel(pred_ref, label_ref, out_ref, *, rows, tile_rows):
    """Per-block partial sums of (pred - label)^2, reduced to one (8, lanes) tile."""
    lanes = pred_ref.shape[1]

    d = pred_ref[...].astype(jnp.float32) - label_ref[...].astype(jnp.float32)
    sq = d * d

    # (tile_rows, lanes) -> (tile_rows//8, 8, lanes): each (8, lanes) group is
    # exactly one f32 vreg, so summing over the leading axis is pure VALU.
    out_ref[...] = sq.reshape(tile_rows // 8, 8, lanes).sum(axis=0)

    if rows % tile_rows != 0:
        # Only the last block overhangs the array; OOB rows hold undefined
        # data, so recompute the partial with those rows masked to 0 there
        # (and only there) and overwrite the unmasked result.
        i = pl.program_id(0)

        @pl.when(i == pl.num_programs(0) - 1)
        def _():
            row_ids = i * tile_rows + jax.lax.broadcasted_iota(
                jnp.int32, sq.shape, 0
            )
            sq_m = jnp.where(row_ids < rows, sq, jnp.float32(0.0))
            out_ref[...] = sq_m.reshape(tile_rows // 8, 8, lanes).sum(axis=0)


def mse_loss(pred, label, *, lanes=128, max_tile_rows=8192,
             min_kernel_elems=1 << 20):
    """Mean squared error over all elements (matches torch.nn.MSELoss default)."""
    assert pred.shape == label.shape, "MSELoss requires matching shapes"
    n = pred.size
    assert n > 0, "MSELoss of an empty tensor is undefined"

    rows = n // lanes
    rem = n % lanes

    # Small-N fallback: the pallas_call fixed cost + the follow-up reduce
    # exceed a single fused XLA elementwise+reduce at small sizes. The kernel
    # path also requires at least 32 full 128-lane rows (dtype-safe tiling).
    if n < min_kernel_elems or rows < 32:
        d = pred.astype(jnp.float32) - label.astype(jnp.float32)
        return jnp.mean(d * d)

    p = pred.reshape(-1)
    l = label.reshape(-1)

    # Ragged tail (< 128 elements): tiny separate jnp reduction, no full-array
    # pad. Only the (rare) ragged path pays one prefix-slice copy.
    tail_sum = jnp.float32(0.0)
    main_n = rows * lanes
    if rem:
        pt = p[main_n:].astype(jnp.float32)
        lt = l[main_n:].astype(jnp.float32)
        tail_sum = jnp.sum((pt - lt) ** 2)
        p = p[:main_n]
        l = l[:main_n]

    # Lane-dense [rows, 128] view; reshape of a contiguous array is free.
    p2 = p.reshape(rows, lanes)
    l2 = l.reshape(rows, lanes)

    # Tile rows: multiple of 32 (safe for f32/bf16/int8 sublane packing), never
    # larger than rows, capped at 8192 (4 MiB/input/buffer f32 -> 16 MiB
    # double-buffered: fits v7x's 64 MiB/TC with headroom, amortizes the
    # ~0.35 us per-step cost to a few % on every generation).
    tile_rows = min(max_tile_rows, (rows // 32) * 32)
    num_blocks = pl.cdiv(rows, tile_rows)

    partials = pl.pallas_call(
        functools.partial(_mse_partial_kernel, rows=rows, tile_rows=tile_rows),
        out_shape=jax.ShapeDtypeStruct((num_blocks * 8, lanes), jnp.float32),
        grid_spec=pltpu.PrefetchScalarGridSpec(
            num_scalar_prefetch=0,
            grid=(num_blocks,),
            in_specs=[
                pl.BlockSpec((tile_rows, lanes), lambda i: (i, 0)),
                pl.BlockSpec((tile_rows, lanes), lambda i: (i, 0)),
            ],
            out_specs=pl.BlockSpec((8, lanes), lambda i: (i, 0)),
        ),
        compiler_params=pltpu.CompilerParams(
            # Independent per-block partials -> both v7x TCs can split the grid.
            dimension_semantics=("parallel",),
            # Above v5e/v6e/v7x scoped defaults; well under v7x's 64 MiB/TC.
            vmem_limit_bytes=40 * 1024 * 1024,
        ),
    )(p2, l2)

    # Tiny final reduction + mean; reciprocal folded at trace time.
    return (jnp.sum(partials) + tail_sum) * jnp.float32(1.0 / n)


if __name__ == "__main__":
    key = jax.random.PRNGKey(0)
    k1, k2, k3, k4 = jax.random.split(key, 4)

    # Aligned case (n % 128 == 0). min_kernel_elems=0 forces the Pallas path
    # at this deliberately small test size.
    pred = jax.random.normal(k1, (2, 4, 32, 32), dtype=jnp.float32)
    label = jax.random.normal(k2, (2, 4, 32, 32), dtype=jnp.float32)
    loss = jax.block_until_ready(mse_loss(pred, label, min_kernel_elems=0))
    ref = jnp.mean((pred - label) ** 2)
    assert jnp.allclose(loss, ref, rtol=1e-5, atol=1e-6), (loss, ref)

    # Ragged case (n % 128 != 0): kernel on the 128-aligned prefix + jnp tail;
    # rows=36, tile_rows=32 -> exercises the last-block row mask.
    pred2 = jax.random.normal(k3, (3, 7, 13, 17), dtype=jnp.float32)
    label2 = jax.random.normal(k4, (3, 7, 13, 17), dtype=jnp.float32)
    loss2 = jax.block_until_ready(mse_loss(pred2, label2, min_kernel_elems=0))
    ref2 = jnp.mean((pred2 - label2) ** 2)
    assert jnp.allclose(loss2, ref2, rtol=1e-5, atol=1e-6), (loss2, ref2)

    # Default small-N fallback path sanity check.
    loss3 = jax.block_until_ready(mse_loss(pred, label))
    assert jnp.allclose(loss3, ref, rtol=1e-5, atol=1e-6), (loss3, ref)

    print("KERNEL_OK")
</pallas_src>

<mosaic_0001>
module attributes {stable_mosaic.version = 11 : i64} {
  func.func @_mse_partial_kernel(%arg0: i32, %arg1: memref<64x128xf32, #tpu.memory_space<vmem>>, %arg2: memref<64x128xf32, #tpu.memory_space<vmem>>, %arg3: memref<8x128xf32, #tpu.memory_space<vmem>>) attributes {dimension_semantics = [#tpu.dimension_semantics<parallel>], iteration_bounds = array<i64: 1>, scalar_prefetch = 0 : i64, scratch_operands = 0 : i64, tpu.core_type = #tpu.core_type<tc>, window_params = [{transform_indices = @transform_0, window_bounds = array<i64: 64, 128>}, {transform_indices = @transform_1, window_bounds = array<i64: 64, 128>}, {transform_indices = @transform_2, window_bounds = array<i64: 8, 128>}]} {
    %c0 = arith.constant 0 : index
    %c0_0 = arith.constant 0 : index
    %0 = vector.load %arg1[%c0, %c0_0] : memref<64x128xf32, #tpu.memory_space<vmem>>, vector<64x128xf32>
    %c0_1 = arith.constant 0 : index
    %c0_2 = arith.constant 0 : index
    %1 = vector.load %arg2[%c0_1, %c0_2] : memref<64x128xf32, #tpu.memory_space<vmem>>, vector<64x128xf32>
    %2 = arith.subf %0, %1 : vector<64x128xf32>
    %3 = arith.mulf %2, %2 : vector<64x128xf32>
    %4 = vector.shape_cast %3 : vector<64x128xf32> to vector<8x8x128xf32>
    %cst = arith.constant dense<0.000000e+00> : vector<8x128xf32>
    %5 = vector.multi_reduction <add>, %4, %cst [0] : vector<8x8x128xf32> to vector<8x128xf32>
    %c0_3 = arith.constant 0 : index
    %c0_4 = arith.constant 0 : index
    %6 = vector.load %arg3[%c0_3, %c0_4] : memref<8x128xf32, #tpu.memory_space<vmem>>, vector<8x128xf32>
    tpu.vector_store %arg3[%c0_3, %c0_4], %5 {strides = array<i32>} : memref<8x128xf32, #tpu.memory_space<vmem>>, vector<8x128xf32>,
    return
  }
  func.func @transform_0(%arg0: i32) -> (i32, i32) {
    %c0_i32 = arith.constant 0 : i32
    %c0_i32_0 = arith.constant 0 : i32
    return %arg0, %c0_i32 : i32, i32
  }
  func.func @transform_1(%arg0: i32) -> (i32, i32) {
    %c0_i32 = arith.constant 0 : i32
    %c0_i32_0 = arith.constant 0 : i32
    return %arg0, %c0_i32 : i32, i32
  }
  func.func @transform_2(%arg0: i32) -> (i32, i32) {
    %c0_i32 = arith.constant 0 : i32
    %c0_i32_0 = arith.constant 0 : i32
    return %arg0, %c0_i32 : i32, i32
  }
}

</mosaic_0001>

<llo_original>
// kernel: tpu_custom_call.1
$region0: #{tpu_custom_call.1}
  #allocation0 [shape = 'u32[]', space=smem, size = 0x4, offset = 0x4, fixed_abs, tag = 'smem constant byte address 0x4 - core index']
  #allocation1 [shape = 'u32[144,128]{1,0:T(1,128)}', space=vmem, size = 0x12000, scoped, tag = 'internal scratch']
  %s0 = inlined_call_operand.hbm [shape: f32[64,128], index: 0, kind: input, shape index: {}]
  %s1 = inlined_call_operand.hbm [shape: f32[64,128], index: 1, kind: input, shape index: {}]
  %s2 = inlined_call_operand.hbm [shape: f32[8,128], index: 2, kind: output, shape index: {}]
  %s3 = sld [smem:[#allocation0]]
  $region26: #{tpu_custom_call.1} parent=0
    _
  %s5 = ssub.s32 1, %s3
  %s6 = scalar_select 0, %s5, %s3
  $region1: #{tpu_custom_call.1} parent=0
    #allocation2 [shape = 'u8[32768]{0}', space=vmem, size = 0x8000, scoped, tag = 'input window, operand 0, single buffered']
    #allocation3 [shape = 's32[1]{0}', space=sflag, size = 0x4, scoped, tag = 'scoped memory for tpu_custom_call.1']
    #allocation4 [shape = 's32[1]{0}', space=sflag, size = 0x4, scoped, tag = 'scoped memory for tpu_custom_call.1']
    #allocation5 [shape = 'u8[32768]{0}', space=vmem, size = 0x8000, scoped, tag = 'input window, operand 1, single buffered']
    #allocation6 [shape = 's32[1]{0}', space=sflag, size = 0x4, scoped, tag = 'scoped memory for tpu_custom_call.1']
    #allocation7 [shape = 'u8[4096]{0}', space=vmem, size = 0x1000, scoped, tag = 'output window, operand 0, single buffered']
    %7 = vsyncpa [#allocation3], 0
    %8 = vsyncpa [#allocation6], 0
    %9 = vsyncpa [#allocation4], 0
    // Predicated region
    $region2: #{tpu_custom_call.1} parent=1 // pred_check
      _
    $region3: #{tpu_custom_call.1} parent=1 // pred_check_branch
      %11 = sbr.rel (0) target = $region5
    $region4: #{tpu_custom_call.1} parent=1 // pred_region
      %s13 = ssub.s32 1024, 1024
      %14 = vsyncadd [#allocation3], %s13
      %s15 = sshll.u32 [#allocation2], 4
      %s16 = int_to_ptr.vmem [resolvable:$true] %s15
      %21 = dma.hbm_to_vmem [thread:$0]  %s0, 1024, %s16, [#allocation3], 128, 128, 8
    $region5: #{tpu_custom_call.1} parent=1 // pred_fallthru
      _
    // Predicated region
    $region6: #{tpu_custom_call.1} parent=1 // pred_check
      _
    $region7: #{tpu_custom_call.1} parent=1 // pred_check_branch
      %23 = sbr.rel (0) target = $region9
    $region8: #{tpu_custom_call.1} parent=1 // pred_region
      %s25 = ssub.s32 1024, 1024
      %26 = vsyncadd [#allocation6], %s25
      %s27 = sshll.u32 [#allocation5], 4
      %s28 = int_to_ptr.vmem [resolvable:$true] %s27
      %33 = dma.hbm_to_vmem [thread:$0]  %s1, 1024, %s28, [#allocation6], 128, 128, 8
    $region9: #{tpu_custom_call.1} parent=1 // pred_fallthru
      _
    // Predicated region
    $region10: #{tpu_custom_call.1} parent=1 // pred_check
      _
    $region11: #{tpu_custom_call.1} parent=1 // pred_check_branch
      %35 = sbr.rel (0) target = $region13
    $region12: #{tpu_custom_call.1} parent=1 // pred_region
      %36 = dma.done [#allocation3], 1024
    $region13: #{tpu_custom_call.1} parent=1 // pred_fallthru
      _
    // Predicated region
    $region14: #{tpu_custom_call.1} parent=1 // pred_check
      _
    $region15: #{tpu_custom_call.1} parent=1 // pred_check_branch
      %38 = sbr.rel (0) target = $region17
    $region16: #{tpu_custom_call.1} parent=1 // pred_region
      %39 = dma.done [#allocation6], 1024
    $region17: #{tpu_custom_call.1} parent=1 // pred_fallthru
      _
    %v40 = vld [vmem:[#allocation2] sm:$0xff]
    %v41 = vld [vmem:[#allocation2 + $0x8] sm:$0xff]
    %v42 = vld [vmem:[#allocation2 + $0x10] sm:$0xff]
    %v43 = vld [vmem:[#allocation2 + $0x18] sm:$0xff]
    %v44 = vld [vmem:[#allocation2 + $0x20] sm:$0xff]
    %v45 = vld [vmem:[#allocation2 + $0x28] sm:$0xff]
    %v46 = vld [vmem:[#allocation2 + $0x30] sm:$0xff]
    %v47 = vld [vmem:[#allocation2 + $0x38] sm:$0xff]
    %v48 = vld [vmem:[#allocation5] sm:$0xff]
    %v49 = vld [vmem:[#allocation5 + $0x8] sm:$0xff]
    %v50 = vld [vmem:[#allocation5 + $0x10] sm:$0xff]
    %v51 = vld [vmem:[#allocation5 + $0x18] sm:$0xff]
    %v52 = vld [vmem:[#allocation5 + $0x20] sm:$0xff]
    %v53 = vld [vmem:[#allocation5 + $0x28] sm:$0xff]
    %v54 = vld [vmem:[#allocation5 + $0x30] sm:$0xff]
    %v55 = vld [vmem:[#allocation5 + $0x38] sm:$0xff]
    %v56 = vsub.f32 %v40, %v48
    %v57 = vsub.f32 %v41, %v49
    %v58 = vsub.f32 %v42, %v50
    %v59 = vsub.f32 %v43, %v51
    %v60 = vsub.f32 %v44, %v52
    %v61 = vsub.f32 %v45, %v53
    %v62 = vsub.f32 %v46, %v54
    %v63 = vsub.f32 %v47, %v55
    %v64 = vmul.f32 %v56, %v56
    %v65 = vmul.f32 %v57, %v57
    %v66 = vmul.f32 %v58, %v58
    %v67 = vmul.f32 %v59, %v59
    %v68 = vmul.f32 %v60, %v60
    %v69 = vmul.f32 %v61, %v61
    %v70 = vmul.f32 %v62, %v62
    %v71 = vmul.f32 %v63, %v63
    %v72 = vadd.f32 %v64, %v65
    %v73 = vadd.f32 %v72, %v66
    %v74 = vadd.f32 %v73, %v67
    %v75 = vadd.f32 %v74, %v68
    %v76 = vadd.f32 %v75, %v69
    %v77 = vadd.f32 %v76, %v70
    %v78 = vadd.f32 %v77, %v71
    %79 = vst [vmem:[#allocation7] sm:$0xff] %v78
    // Predicated region
    $region18: #{tpu_custom_call.1} parent=1 // pred_check
      _
    $region19: #{tpu_custom_call.1} parent=1 // pred_check_branch
      %81 = sbr.rel (0) target = $region21
    $region20: #{tpu_custom_call.1} parent=1 // pred_region
      %s83 = ssub.s32 128, 128
      %84 = vsyncadd [#allocation4], %s83
      %s86 = sshll.u32 [#allocation7], 4
      %s87 = int_to_ptr.vmem [resolvable:$true] %s86
      %89 = dma.vmem_to_hbm [thread:$0]  %s87, 128, %s2, [#allocation4]
    $region21: #{tpu_custom_call.1} parent=1 // pred_fallthru
      _
    // Predicated region
    $region22: #{tpu_custom_call.1} parent=1 // pred_check
      _
    $region23: #{tpu_custom_call.1} parent=1 // pred_check_branch
      %91 = sbr.rel (0) target = $region25
    $region24: #{tpu_custom_call.1} parent=1 // pred_region
      %92 = dma.done [#allocation4], 128
    $region25: #{tpu_custom_call.1} parent=1 // pred_fallthru
      _
    %93 = vsyncpa [#allocation3], 1
    %94 = vsyncpa [#allocation6], 1
    %95 = vsyncpa [#allocation4], 1

</llo_original>
